<compile_context>
chip_gen: v5e
topology: v5e:2x2
jax: 0.10.0
libtpu: 0.0.40
codegen_flags: <defaults>
</compile_context>

<pallas_src>
import jax
import jax.numpy as jnp
from jax import lax
from jax.experimental import pallas as pl
from jax.experimental.pallas import tpu as pltpu

EPS = 1e-5  # PyTorch nn.LayerNorm default


def _round_up(x, m):
    return (x + m - 1) // m * m


def _lru_embed_kernel(ids_ref, tab_ref, gamma_ref, beta_ref, out_ref):
    # ids_ref  : (M_TILE, 1) int32   -- tile-aligned token ids
    # tab_ref  : (V, D)      bf16    -- full embedding table (VMEM resident)
    # gamma_ref: (1, D)      f32
    # beta_ref : (1, D)      f32
    # out_ref  : (M_TILE, D) f32
    m_tile = ids_ref.shape[0]
    V = tab_ref.shape[0]

    ids = ids_ref[...]                                          # (M, 1) int32
    v_iota = lax.broadcasted_iota(jnp.int32, (m_tile, V), 1)    # (M, V)
    # One-hot in the table dtype (0/1 are exact in bf16); go through f32 for a
    # guaranteed-supported bool -> float conversion path.
    onehot = (ids == v_iota).astype(jnp.float32).astype(tab_ref.dtype)

    # Gather via MXU: (M, V) @ (V, D) -> (M, D), f32 accumulation (exact for
    # a 0/1 one-hot: each output element is a single bf16 table entry).
    emb = jnp.dot(onehot, tab_ref[...],
                  preferred_element_type=jnp.float32)           # (M, D) f32

    # LayerNorm over last dim D (biased variance, eps inside rsqrt — matches
    # torch.nn.LayerNorm).
    mean = jnp.mean(emb, axis=-1, keepdims=True)                # (M, 1)
    centered = emb - mean
    var = jnp.mean(centered * centered, axis=-1, keepdims=True)
    normed = centered * lax.rsqrt(var + EPS)                    # (M, D)

    out_ref[...] = normed * gamma_ref[...] + beta_ref[...]


def lru_embedding_forward(x, table, gamma, beta, *, m_tile_max=256):
    """x: (B, S) int32 token ids. Returns (h: (B, S, D) f32, mask: (B, S) bool)."""
    B, S = x.shape
    V, D = table.shape
    n_rows = B * S

    # Row-tile size: fill the MXU M dimension; don't over-pad tiny inputs.
    m_tile = min(m_tile_max, _round_up(max(n_rows, 8), 128))
    n_pad = _round_up(n_rows, m_tile)

    ids = x.reshape(n_rows).astype(jnp.int32)
    if n_pad != n_rows:
        # Padded rows use id 0 (a valid row); their outputs are sliced away.
        ids = jnp.pad(ids, (0, n_pad - n_rows))
    ids2 = ids.reshape(n_pad, 1)

    tab_bf16 = table.astype(jnp.bfloat16)     # halves table DMA / VMEM bytes
    gamma2 = gamma.reshape(1, D).astype(jnp.float32)
    beta2 = beta.reshape(1, D).astype(jnp.float32)

    grid = (n_pad // m_tile,)

    h_flat = pl.pallas_call(
        _lru_embed_kernel,
        out_shape=jax.ShapeDtypeStruct((n_pad, D), jnp.float32),
        grid_spec=pltpu.PrefetchScalarGridSpec(
            num_scalar_prefetch=0,
            grid=grid,
            in_specs=[
                pl.BlockSpec((m_tile, 1), lambda i: (i, 0)),   # token ids (tile-aligned)
                pl.BlockSpec((V, D), lambda i: (0, 0)),        # bf16 embedding table
                pl.BlockSpec((1, D), lambda i: (0, 0)),        # layernorm gamma
                pl.BlockSpec((1, D), lambda i: (0, 0)),        # layernorm beta
            ],
            out_specs=pl.BlockSpec((m_tile, D), lambda i: (i, 0)),
        ),
        compiler_params=pltpu.CompilerParams(
            dimension_semantics=("parallel",),   # row tiles are independent (megacore-friendly)
            vmem_limit_bytes=64 * 1024 * 1024,
        ),
    )(ids2, tab_bf16, gamma2, beta2)

    h = h_flat[:n_rows].reshape(B, S, D)   # free row-major reshape
    mask = x > 0                           # trivial elementwise glue, plain JAX
    return h, mask


def _reference(x, table, gamma, beta):
    emb = table[x]                                             # (B, S, D)
    mean = jnp.mean(emb, axis=-1, keepdims=True)
    centered = emb - mean
    var = jnp.mean(centered * centered, axis=-1, keepdims=True)
    h = centered * lax.rsqrt(var + EPS) * gamma + beta
    return h, x > 0


if __name__ == "__main__":
    # Small config implied by the module: num_items = 127 -> V = 128, D = 32.
    B, S, V, D = 2, 8, 128, 32

    key = jax.random.PRNGKey(0)
    k_ids, k_tab = jax.random.split(key)

    # Token ids in [0, V); 0 is the pad token (mask == False there).
    x = jax.random.randint(k_ids, (B, S), 0, V, dtype=jnp.int32)
    x = x.at[0, 0].set(0)  # make sure mask has at least one False

    table = jax.random.normal(k_tab, (V, D), dtype=jnp.float32)
    gamma = jnp.ones((D,), dtype=jnp.float32)
    beta = jnp.zeros((D,), dtype=jnp.float32)

    h, mask = lru_embedding_forward(x, table, gamma, beta)
    jax.block_until_ready(h)
    jax.block_until_ready(mask)

    # (1) Exact check vs. a reference using the same bf16 table quantization
    #     (the one-hot gather + f32 LayerNorm should match to fp32 roundoff).
    table_q = table.astype(jnp.bfloat16).astype(jnp.float32)
    h_ref_q, mask_ref = _reference(x, table_q, gamma, beta)
    # (2) Loose check vs. the full-f32 PyTorch-equivalent reference (bf16 table
    #     costs ~3 decimal digits on table values, washed out by LayerNorm).
    h_ref_f32, _ = _reference(x, table, gamma, beta)

    assert h.shape == (B, S, D) and h.dtype == jnp.float32
    assert mask.shape == (B, S) and mask.dtype == jnp.bool_
    assert jnp.allclose(h, h_ref_q, atol=1e-5, rtol=1e-5)
    assert jnp.allclose(h, h_ref_f32, atol=5e-2, rtol=5e-2)
    assert jnp.array_equal(mask, mask_ref)

    print("KERNEL_OK")
</pallas_src>

<mosaic_0001>
module attributes {stable_mosaic.version = 11 : i64} {
  func.func @_lru_embed_kernel(%arg0: i32, %arg1: memref<128x1xi32, #tpu.memory_space<vmem>>, %arg2: memref<128x32xbf16, #tpu.memory_space<vmem>>, %arg3: memref<1x32xf32, #tpu.memory_space<vmem>>, %arg4: memref<1x32xf32, #tpu.memory_space<vmem>>, %arg5: memref<128x32xf32, #tpu.memory_space<vmem>>) attributes {dimension_semantics = [#tpu.dimension_semantics<parallel>], iteration_bounds = array<i64: 1>, scalar_prefetch = 0 : i64, scratch_operands = 0 : i64, tpu.core_type = #tpu.core_type<tc>, window_params = [{transform_indices = @transform_0, window_bounds = array<i64: 128, 1>}, {pipeline_mode = #tpu.pipeline_mode<synchronous>, transform_indices = @transform_1, window_bounds = array<i64: 128, 32>}, {pipeline_mode = #tpu.pipeline_mode<synchronous>, transform_indices = @transform_2, window_bounds = array<i64: 1, 32>}, {pipeline_mode = #tpu.pipeline_mode<synchronous>, transform_indices = @transform_3, window_bounds = array<i64: 1, 32>}, {transform_indices = @transform_4, window_bounds = array<i64: 128, 32>}]} {
    %c0 = arith.constant 0 : index
    %c0_0 = arith.constant 0 : index
    %0 = vector.load %arg1[%c0, %c0_0] : memref<128x1xi32, #tpu.memory_space<vmem>>, vector<128x1xi32>
    %1 = tpu.iota {dimensions = array<i32: 1>} : vector<128x128xi32>
    %2 = vector.broadcast %0 : vector<128x1xi32> to vector<128x128xi32>
    %3 = arith.cmpi eq, %2, %1 : vector<128x128xi32>
    %4 = arith.extui %3 : vector<128x128xi1> to vector<128x128xi32>
    %5 = arith.sitofp %4 : vector<128x128xi32> to vector<128x128xf32>
    %6 = arith.truncf %5 : vector<128x128xf32> to vector<128x128xbf16>
    %c0_1 = arith.constant 0 : index
    %c0_2 = arith.constant 0 : index
    %7 = vector.load %arg2[%c0_1, %c0_2] : memref<128x32xbf16, #tpu.memory_space<vmem>>, vector<128x32xbf16>
    %cst = arith.constant dense<0.000000e+00> : vector<128x32xf32>
    %8 = tpu.matmul %6, %7, %cst {dimension_numbers = #tpu.dot_dimension_numbers<[1], [0], [0], [1], [0, 0, 1, 1], [], []>} : vector<128x128xbf16>, vector<128x32xbf16>, vector<128x32xf32> -> vector<128x32xf32>
    %cst_3 = arith.constant dense<0.000000e+00> : vector<128xf32>
    %9 = vector.multi_reduction <add>, %8, %cst_3 [1] : vector<128x32xf32> to vector<128xf32>
    %10 = vector.shape_cast %9 : vector<128xf32> to vector<128x1xf32>
    %cst_4 = arith.constant 3.200000e+01 : f32
    %11 = vector.broadcast %cst_4 : f32 to vector<128x1xf32>
    %12 = arith.divf %10, %11 : vector<128x1xf32>
    %13 = vector.broadcast %12 : vector<128x1xf32> to vector<128x32xf32>
    %14 = arith.subf %8, %13 : vector<128x32xf32>
    %15 = arith.mulf %14, %14 : vector<128x32xf32>
    %cst_5 = arith.constant dense<0.000000e+00> : vector<128xf32>
    %16 = vector.multi_reduction <add>, %15, %cst_5 [1] : vector<128x32xf32> to vector<128xf32>
    %17 = vector.shape_cast %16 : vector<128xf32> to vector<128x1xf32>
    %cst_6 = arith.constant 3.200000e+01 : f32
    %18 = vector.broadcast %cst_6 : f32 to vector<128x1xf32>
    %19 = arith.divf %17, %18 : vector<128x1xf32>
    %cst_7 = arith.constant 9.99999974E-6 : f32
    %20 = vector.broadcast %cst_7 : f32 to vector<128x1xf32>
    %21 = arith.addf %19, %20 : vector<128x1xf32>
    %22 = math.rsqrt %21 : vector<128x1xf32>
    %23 = vector.broadcast %22 : vector<128x1xf32> to vector<128x32xf32>
    %24 = arith.mulf %14, %23 : vector<128x32xf32>
    %c0_8 = arith.constant 0 : index
    %c0_9 = arith.constant 0 : index
    %25 = vector.load %arg3[%c0_8, %c0_9] : memref<1x32xf32, #tpu.memory_space<vmem>>, vector<1x32xf32>
    %26 = vector.broadcast %25 : vector<1x32xf32> to vector<128x32xf32>
    %27 = arith.mulf %24, %26 : vector<128x32xf32>
    %c0_10 = arith.constant 0 : index
    %c0_11 = arith.constant 0 : index
    %28 = vector.load %arg4[%c0_10, %c0_11] : memref<1x32xf32, #tpu.memory_space<vmem>>, vector<1x32xf32>
    %29 = vector.broadcast %28 : vector<1x32xf32> to vector<128x32xf32>
    %30 = arith.addf %27, %29 : vector<128x32xf32>
    %c0_12 = arith.constant 0 : index
    %c0_13 = arith.constant 0 : index
    %31 = vector.load %arg5[%c0_12, %c0_13] : memref<128x32xf32, #tpu.memory_space<vmem>>, vector<128x32xf32>
    tpu.vector_store %arg5[%c0_12, %c0_13], %30 {strides = array<i32>} : memref<128x32xf32, #tpu.memory_space<vmem>>, vector<128x32xf32>,
    return
  }
  func.func @transform_0(%arg0: i32) -> (i32, i32) {
    %c0_i32 = arith.constant 0 : i32
    %c0_i32_0 = arith.constant 0 : i32
    return %arg0, %c0_i32 : i32, i32
  }
  func.func @transform_1(%arg0: i32) -> (i32, i32) {
    %c0_i32 = arith.constant 0 : i32
    %c0_i32_0 = arith.constant 0 : i32
    %c0_i32_1 = arith.constant 0 : i32
    return %c0_i32, %c0_i32_0 : i32, i32
  }
  func.func @transform_2(%arg0: i32) -> (i32, i32) {
    %c0_i32 = arith.constant 0 : i32
    %c0_i32_0 = arith.constant 0 : i32
    %c0_i32_1 = arith.constant 0 : i32
    return %c0_i32, %c0_i32_0 : i32, i32
  }
  func.func @transform_3(%arg0: i32) -> (i32, i32) {
    %c0_i32 = arith.constant 0 : i32
    %c0_i32_0 = arith.constant 0 : i32
    %c0_i32_1 = arith.constant 0 : i32
    return %c0_i32, %c0_i32_0 : i32, i32
  }
  func.func @transform_4(%arg0: i32) -> (i32, i32) {
    %c0_i32 = arith.constant 0 : i32
    %c0_i32_0 = arith.constant 0 : i32
    return %arg0, %c0_i32 : i32, i32
  }
}

</mosaic_0001>

<llo_original>
// kernel: tpu_custom_call.1
$region0: #{tpu_custom_call.1}
  #allocation0 [shape = 'u32[]', space=smem, size = 0x4, offset = 0x4, fixed_abs, tag = 'smem constant byte address 0x4 - core index']
  #allocation1 [shape = 'u32[72,128]{1,0:T(1,128)}', space=vmem, size = 0x9000, scoped, tag = 'internal scratch']
  %s0 = inlined_call_operand.vmem [shape: s32[128,1], index: 0, kind: input, shape index: {}]
  %s1 = inlined_call_operand.vmem [shape: bf16[128,32], index: 1, kind: input, shape index: {}]
  %s2 = inlined_call_operand.vmem [shape: f32[1,32], index: 2, kind: input, shape index: {}]
  %s3 = inlined_call_operand.vmem [shape: f32[1,32], index: 3, kind: input, shape index: {}]
  %s4 = inlined_call_operand.vmem [shape: f32[128,32], index: 4, kind: output, shape index: {}]
  %s5 = sld [smem:[#allocation0]]
  $region26: #{tpu_custom_call.1} parent=0
    _
  %s7 = ssub.s32 1, %s5
  %s8 = scalar_select 0, %s7, %s5
  // Predicated region
  $region2: #{tpu_custom_call.1} parent=0 // pred_check
    _
  $region3: #{tpu_custom_call.1} parent=0 // pred_check_branch
    %10 = sbr.rel (0) target = $region5
  $region4: #{tpu_custom_call.1} parent=0 // pred_region
    _
  $region5: #{tpu_custom_call.1} parent=0 // pred_fallthru
    _
  // Predicated region
  $region6: #{tpu_custom_call.1} parent=0 // pred_check
    _
  $region7: #{tpu_custom_call.1} parent=0 // pred_check_branch
    %12 = sbr.rel (0) target = $region9
  $region8: #{tpu_custom_call.1} parent=0 // pred_region
    _
  $region9: #{tpu_custom_call.1} parent=0 // pred_fallthru
    _
  // Predicated region
  $region10: #{tpu_custom_call.1} parent=0 // pred_check
    _
  $region11: #{tpu_custom_call.1} parent=0 // pred_check_branch
    %14 = sbr.rel (0) target = $region13
  $region12: #{tpu_custom_call.1} parent=0 // pred_region
    _
  $region13: #{tpu_custom_call.1} parent=0 // pred_fallthru
    _
  // Predicated region
  $region14: #{tpu_custom_call.1} parent=0 // pred_check
    _
  $region15: #{tpu_custom_call.1} parent=0 // pred_check_branch
    %16 = sbr.rel (0) target = $region17
  $region16: #{tpu_custom_call.1} parent=0 // pred_region
    _
  $region17: #{tpu_custom_call.1} parent=0 // pred_fallthru
    _
  %v17 = vld [vmem:[%s0] sm:$0xff]
  %v18 = vld [vmem:[%s0 + $0x8] sm:$0xff]
  %v19 = vld [vmem:[%s0 + $0x10] sm:$0xff]
  %v20 = vld [vmem:[%s0 + $0x18] sm:$0xff]
  %v21 = vld [vmem:[%s0 + $0x20] sm:$0xff]
  %v22 = vld [vmem:[%s0 + $0x28] sm:$0xff]
  %v23 = vld [vmem:[%s0 + $0x30] sm:$0xff]
  %v24 = vld [vmem:[%s0 + $0x38] sm:$0xff]
  %v25 = vld [vmem:[%s0 + $0x40] sm:$0xff]
  %v26 = vld [vmem:[%s0 + $0x48] sm:$0xff]
  %v27 = vld [vmem:[%s0 + $0x50] sm:$0xff]
  %v28 = vld [vmem:[%s0 + $0x58] sm:$0xff]
  %v29 = vld [vmem:[%s0 + $0x60] sm:$0xff]
  %v30 = vld [vmem:[%s0 + $0x68] sm:$0xff]
  %v31 = vld [vmem:[%s0 + $0x70] sm:$0xff]
  %v32 = vld [vmem:[%s0 + $0x78] sm:$0xff]
  %v33 = vlaneseq
  %v34 = vand.u32 %v33, 127
  %35 = vset.pattern.permute.xlu0 0
  %36 = vperm.xlu0 %35, %v17
  %v37 = vpop.permute.xlu0 %36
  %38 = vset.pattern.permute.xlu0 0
  %39 = vperm.xlu0 %38, %v18
  %v40 = vpop.permute.xlu0 %39
  %41 = vset.pattern.permute.xlu0 0
  %42 = vperm.xlu0 %41, %v19
  %v43 = vpop.permute.xlu0 %42
  %44 = vset.pattern.permute.xlu0 0
  %45 = vperm.xlu0 %44, %v20
  %v46 = vpop.permute.xlu0 %45
  %47 = vset.pattern.permute.xlu0 0
  %48 = vperm.xlu0 %47, %v21
  %v49 = vpop.permute.xlu0 %48
  %50 = vset.pattern.permute.xlu0 0
  %51 = vperm.xlu0 %50, %v22
  %v52 = vpop.permute.xlu0 %51
  %53 = vset.pattern.permute.xlu0 0
  %54 = vperm.xlu0 %53, %v23
  %v55 = vpop.permute.xlu0 %54
  %56 = vset.pattern.permute.xlu0 0
  %57 = vperm.xlu0 %56, %v24
  %v58 = vpop.permute.xlu0 %57
  %59 = vset.pattern.permute.xlu0 0
  %60 = vperm.xlu0 %59, %v25
  %v61 = vpop.permute.xlu0 %60
  %62 = vset.pattern.permute.xlu0 0
  %63 = vperm.xlu0 %62, %v26
  %v64 = vpop.permute.xlu0 %63
  %65 = vset.pattern.permute.xlu0 0
  %66 = vperm.xlu0 %65, %v27
  %v67 = vpop.permute.xlu0 %66
  %68 = vset.pattern.permute.xlu0 0
  %69 = vperm.xlu0 %68, %v28
  %v70 = vpop.permute.xlu0 %69
  %71 = vset.pattern.permute.xlu0 0
  %72 = vperm.xlu0 %71, %v29
  %v73 = vpop.permute.xlu0 %72
  %74 = vset.pattern.permute.xlu0 0
  %75 = vperm.xlu0 %74, %v30
  %v76 = vpop.permute.xlu0 %75
  %77 = vset.pattern.permute.xlu0 0
  %78 = vperm.xlu0 %77, %v31
  %v79 = vpop.permute.xlu0 %78
  %80 = vset.pattern.permute.xlu0 0
  %81 = vperm.xlu0 %80, %v32
  %v82 = vpop.permute.xlu0 %81
  %vm83 = vcmp.eq.s32.totalorder %v37, %v34
  %vm84 = vcmp.eq.s32.totalorder %v40, %v34
  %vm85 = vcmp.eq.s32.totalorder %v43, %v34
  %vm86 = vcmp.eq.s32.totalorder %v46, %v34
  %vm87 = vcmp.eq.s32.totalorder %v49, %v34
  %vm88 = vcmp.eq.s32.totalorder %v52, %v34
  %vm89 = vcmp.eq.s32.totalorder %v55, %v34
  %vm90 = vcmp.eq.s32.totalorder %v58, %v34
  %vm91 = vcmp.eq.s32.totalorder %v61, %v34
  %vm92 = vcmp.eq.s32.totalorder %v64, %v34
  %vm93 = vcmp.eq.s32.totalorder %v67, %v34
  %vm94 = vcmp.eq.s32.totalorder %v70, %v34
  %vm95 = vcmp.eq.s32.totalorder %v73, %v34
  %vm96 = vcmp.eq.s32.totalorder %v76, %v34
  %vm97 = vcmp.eq.s32.totalorder %v79, %v34
  %vm98 = vcmp.eq.s32.totalorder %v82, %v34
  %v99 = vsel %vm83, 1, 0
  %v100 = vsel %vm84, 1, 0
  %v101 = vsel %vm85, 1, 0
  %v102 = vsel %vm86, 1, 0
  %v103 = vsel %vm87, 1, 0
  %v104 = vsel %vm88, 1, 0
  %v105 = vsel %vm89, 1, 0
  %v106 = vsel %vm90, 1, 0
  %v107 = vsel %vm91, 1, 0
  %v108 = vsel %vm92, 1, 0
  %v109 = vsel %vm93, 1, 0
  %v110 = vsel %vm94, 1, 0
  %v111 = vsel %vm95, 1, 0
  %v112 = vsel %vm96, 1, 0
  %v113 = vsel %vm97, 1, 0
  %v114 = vsel %vm98, 1, 0
  %v115 = vcvt.s32.f32 %v99
  %v116 = vcvt.s32.f32 %v100
  %v117 = vcvt.s32.f32 %v101
  %v118 = vcvt.s32.f32 %v102
  %v119 = vcvt.s32.f32 %v103
  %v120 = vcvt.s32.f32 %v104
  %v121 = vcvt.s32.f32 %v105
  %v122 = vcvt.s32.f32 %v106
  %v123 = vcvt.s32.f32 %v107
  %v124 = vcvt.s32.f32 %v108
  %v125 = vcvt.s32.f32 %v109
  %v126 = vcvt.s32.f32 %v110
  %v127 = vcvt.s32.f32 %v111
  %v128 = vcvt.s32.f32 %v112
  %v129 = vcvt.s32.f32 %v113
  %v130 = vcvt.s32.f32 %v114
  %v131 = vpack.c.bf16 %v116, %v115
  %v132 = vpack.c.bf16 %v118, %v117
  %v133 = vpack.c.bf16 %v120, %v119
  %v134 = vpack.c.bf16 %v122, %v121
  %v135 = vpack.c.bf16 %v124, %v123
  %v136 = vpack.c.bf16 %v126, %v125
  %v137 = vpack.c.bf16 %v128, %v127
  %v138 = vpack.c.bf16 %v130, %v129
  %v139 = vld [vmem:[%s1] sm:$0xf]
  %v140 = vld [vmem:[%s1 + $0x4] sm:$0xf]
  %v141 = vld [vmem:[%s1 + $0x8] sm:$0xf]
  %v142 = vld [vmem:[%s1 + $0xc] sm:$0xf]
  %v143 = vld [vmem:[%s1 + $0x10] sm:$0xf]
  %v144 = vld [vmem:[%s1 + $0x14] sm:$0xf]
  %v145 = vld [vmem:[%s1 + $0x18] sm:$0xf]
  %v146 = vld [vmem:[%s1 + $0x1c] sm:$0xf]
  %v147 = vld [vmem:[%s1 + $0x20] sm:$0xf]
  %v148 = vld [vmem:[%s1 + $0x24] sm:$0xf]
  %v149 = vld [vmem:[%s1 + $0x28] sm:$0xf]
  %v150 = vld [vmem:[%s1 + $0x2c] sm:$0xf]
  %v151 = vld [vmem:[%s1 + $0x30] sm:$0xf]
  %v152 = vld [vmem:[%s1 + $0x34] sm:$0xf]
  %v153 = vld [vmem:[%s1 + $0x38] sm:$0xf]
  %v154 = vld [vmem:[%s1 + $0x3c] sm:$0xf]
  %v171 = vunpack.c.l.b16 %v139
  %v172 = vunpack.c.l.b16 %v140
  %v173 = vunpack.c.l.b16 %v141
  %v174 = vunpack.c.l.b16 %v142
  %v175 = vunpack.c.l.b16 %v143
  %v176 = vunpack.c.l.b16 %v144
  %v177 = vunpack.c.l.b16 %v145
  %v178 = vunpack.c.l.b16 %v146
  %v179 = vunpack.c.l.b16 %v147
  %v180 = vunpack.c.l.b16 %v148
  %v181 = vunpack.c.l.b16 %v149
  %v182 = vunpack.c.l.b16 %v150
  %v183 = vunpack.c.l.b16 %v151
  %v184 = vunpack.c.l.b16 %v152
  %v185 = vunpack.c.l.b16 %v153
  %v186 = vunpack.c.l.b16 %v154
  %v187 = vpack.c.b16 %v172, %v171
  %v188 = vpack.c.b16 %v174, %v173
  %v189 = vpack.c.b16 %v176, %v175
  %v190 = vpack.c.b16 %v178, %v177
  %v191 = vpack.c.b16 %v180, %v179
  %v192 = vpack.c.b16 %v182, %v181
  %v193 = vpack.c.b16 %v184, %v183
  %v194 = vpack.c.b16 %v186, %v185
  %203 = vmatpush.bf16.msra.mxu0 %v194
  %204 = vmatpush.bf16.msra.mxu0 %v193
  %205 = vmatpush.bf16.msra.mxu0 %v192
  %206 = vmatpush.bf16.msra.mxu0 %v191
  %207 = vmatpush.bf16.msra.mxu0 %v190
  %208 = vmatpush.bf16.msra.mxu0 %v189
  %209 = vmatpush.bf16.msra.mxu0 %v188
  %210 = vmatpush.bf16.msra.mxu0 %v187
  %211 = vmatmul.bf16.gmra.mxu0 %v131
  %v212 = vpop.f32.mrf.mxu0
  %v213 = vadd.f32 0.0, %v212
  %v214 = vpop.f32.mrf.mxu0
  %v215 = vadd.f32 0.0, %v214
  %216 = vmatmul.bf16.gmra.mxu0 %v132
  %v217 = vpop.f32.mrf.mxu0
  %v218 = vadd.f32 0.0, %v217
  %v219 = vpop.f32.mrf.mxu0
  %v220 = vadd.f32 0.0, %v219
  %221 = vmatmul.bf16.gmra.mxu0 %v133
  %v222 = vpop.f32.mrf.mxu0
  %v223 = vadd.f32 0.0, %v222
  %v224 = vpop.f32.mrf.mxu0
  %v225 = vadd.f32 0.0, %v224
  %226 = vmatmul.bf16.gmra.mxu0 %v134
  %v227 = vpop.f32.mrf.mxu0
  %v228 = vadd.f32 0.0, %v227
  %v229 = vpop.f32.mrf.mxu0
  %v230 = vadd.f32 0.0, %v229
  %231 = vmatmul.bf16.gmra.mxu0 %v135
  %v232 = vpop.f32.mrf.mxu0
  %v233 = vadd.f32 0.0, %v232
  %v234 = vpop.f32.mrf.mxu0
  %v235 = vadd.f32 0.0, %v234
  %236 = vmatmul.bf16.gmra.mxu0 %v136
  %v237 = vpop.f32.mrf.mxu0
  %v238 = vadd.f32 0.0, %v237
  %v239 = vpop.f32.mrf.mxu0
  %v240 = vadd.f32 0.0, %v239
  %241 = vmatmul.bf16.gmra.mxu0 %v137
  %v242 = vpop.f32.mrf.mxu0
  %v243 = vadd.f32 0.0, %v242
  %v244 = vpop.f32.mrf.mxu0
  %v245 = vadd.f32 0.0, %v244
  %246 = vmatmul.bf16.gmra.mxu0 %v138
  %v247 = vpop.f32.mrf.mxu0
  %v248 = vadd.f32 0.0, %v247
  %v249 = vpop.f32.mrf.mxu0
  %v250 = vadd.f32 0.0, %v249
  %251 = vdwg.mxu0
  %vm252 = vcmask 261120
  %v253 = vsel %vm252, %v213, 0.0
  %254 = vadd.xlane.f32.xlu0 %v253
  %v255 = vpop.xlane.xlu0 %254
  %v256 = vsel %vm252, %v215, 0.0
  %257 = vadd.xlane.f32.xlu0 %v256
  %v258 = vpop.xlane.xlu0 %257
  %v259 = vsel %vm252, %v218, 0.0
  %260 = vadd.xlane.f32.xlu0 %v259
  %v261 = vpop.xlane.xlu0 %260
  %v262 = vsel %vm252, %v220, 0.0
  %263 = vadd.xlane.f32.xlu0 %v262
  %v264 = vpop.xlane.xlu0 %263
  %v265 = vsel %vm252, %v223, 0.0
  %266 = vadd.xlane.f32.xlu0 %v265
  %v267 = vpop.xlane.xlu0 %266
  %v268 = vsel %vm252, %v225, 0.0
  %269 = vadd.xlane.f32.xlu0 %v268
  %v270 = vpop.xlane.xlu0 %269
  %v271 = vsel %vm252, %v228, 0.0
  %272 = vadd.xlane.f32.xlu0 %v271
  %v273 = vpop.xlane.xlu0 %272
  %v274 = vsel %vm252, %v230, 0.0
  %275 = vadd.xlane.f32.xlu0 %v274
  %v276 = vpop.xlane.xlu0 %275
  %v277 = vsel %vm252, %v233, 0.0
  %278 = vadd.xlane.f32.xlu0 %v277
  %v279 = vpop.xlane.xlu0 %278
  %v280 = vsel %vm252, %v235, 0.0
  %281 = vadd.xlane.f32.xlu0 %v280
  %v282 = vpop.xlane.xlu0 %281
  %v283 = vsel %vm252, %v238, 0.0
  %284 = vadd.xlane.f32.xlu0 %v283
  %v285 = vpop.xlane.xlu0 %284
  %v286 = vsel %vm252, %v240, 0.0
  %287 = vadd.xlane.f32.xlu0 %v286
  %v288 = vpop.xlane.xlu0 %287
  %v289 = vsel %vm252, %v243, 0.0
  %290 = vadd.xlane.f32.xlu0 %v289
  %v291 = vpop.xlane.xlu0 %290
  %v292 = vsel %vm252, %v245, 0.0
  %293 = vadd.xlane.f32.xlu0 %v292
  %v294 = vpop.xlane.xlu0 %293
  %v295 = vsel %vm252, %v248, 0.0
  %296 = vadd.xlane.f32.xlu0 %v295
  %v297 = vpop.xlane.xlu0 %296
  %v298 = vsel %vm252, %v250, 0.0
  %299 = vadd.xlane.f32.xlu0 %v298
  %v300 = vpop.xlane.xlu0 %299
  %v301 = vrcp.pop 32.0
  %v302 = vmul.f32 32.0, %v301
  %v303 = vsub.f32 1.0, %v302
  %v304 = vmul.f32 %v301, %v303
  %v305 = vadd.f32 %v301, %v304
  %vm306 = vweird.f32 %v301
  %v307 = vsel %vm306, %v301, %v305
  %v308 = vmul.f32 %v255, %v307
  %v309 = vmul.f32 %v258, %v307
  %v310 = vmul.f32 %v261, %v307
  %v311 = vmul.f32 %v264, %v307
  %v312 = vmul.f32 %v267, %v307
  %v313 = vmul.f32 %v270, %v307
  %v314 = vmul.f32 %v273, %v307
  %v315 = vmul.f32 %v276, %v307
  %v316 = vmul.f32 %v279, %v307
  %v317 = vmul.f32 %v282, %v307
  %v318 = vmul.f32 %v285, %v307
  %v319 = vmul.f32 %v288, %v307
  %v320 = vmul.f32 %v291, %v307
  %v321 = vmul.f32 %v294, %v307
  %v322 = vmul.f32 %v297, %v307
  %v323 = vmul.f32 %v300, %v307
  %v324 = vsub.f32 %v213, %v308
  %v325 = vsub.f32 %v215, %v309
  %v326 = vsub.f32 %v218, %v310
  %v327 = vsub.f32 %v220, %v311
  %v328 = vsub.f32 %v223, %v312
  %v329 = vsub.f32 %v225, %v313
  %v330 = vsub.f32 %v228, %v314
  %v331 = vsub.f32 %v230, %v315
  %v332 = vsub.f32 %v233, %v316
  %v333 = vsub.f32 %v235, %v317
  %v334 = vsub.f32 %v238, %v318
  %v335 = vsub.f32 %v240, %v319
  %v336 = vsub.f32 %v243, %v320
  %v337 = vsub.f32 %v245, %v321
  %v338 = vsub.f32 %v248, %v322
  %v339 = vsub.f32 %v250, %v323
  %v340 = vmul.f32 %v324, %v324
  %v341 = vmul.f32 %v325, %v325
  %v342 = vmul.f32 %v326, %v326
  %v343 = vmul.f32 %v327, %v327
  %v344 = vmul.f32 %v328, %v328
  %v345 = vmul.f32 %v329, %v329
  %v346 = vmul.f32 %v330, %v330
  %v347 = vmul.f32 %v331, %v331
  %v348 = vmul.f32 %v332, %v332
  %v349 = vmul.f32 %v333, %v333
  %v350 = vmul.f32 %v334, %v334
  %v351 = vmul.f32 %v335, %v335
  %v352 = vmul.f32 %v336, %v336
  %v353 = vmul.f32 %v337, %v337
  %v354 = vmul.f32 %v338, %v338
  %v355 = vmul.f32 %v339, %v339
  %v356 = vsel %vm252, %v340, 0.0
  %357 = vadd.xlane.f32.xlu0 %v356
  %v358 = vpop.xlane.xlu0 %357
  %v359 = vsel %vm252, %v341, 0.0
  %360 = vadd.xlane.f32.xlu0 %v359
  %v361 = vpop.xlane.xlu0 %360
  %v362 = vsel %vm252, %v342, 0.0
  %363 = vadd.xlane.f32.xlu0 %v362
  %v364 = vpop.xlane.xlu0 %363
  %v365 = vsel %vm252, %v343, 0.0
  %366 = vadd.xlane.f32.xlu0 %v365
  %v367 = vpop.xlane.xlu0 %366
  %v368 = vsel %vm252, %v344, 0.0
  %369 = vadd.xlane.f32.xlu0 %v368
  %v370 = vpop.xlane.xlu0 %369
  %v371 = vsel %vm252, %v345, 0.0
  %372 = vadd.xlane.f32.xlu0 %v371
  %v373 = vpop.xlane.xlu0 %372
  %v374 = vsel %vm252, %v346, 0.0
  %375 = vadd.xlane.f32.xlu0 %v374
  %v376 = vpop.xlane.xlu0 %375
  %v377 = vsel %vm252, %v347, 0.0
  %378 = vadd.xlane.f32.xlu0 %v377
  %v379 = vpop.xlane.xlu0 %378
  %v380 = vsel %vm252, %v348, 0.0
  %381 = vadd.xlane.f32.xlu0 %v380
  %v382 = vpop.xlane.xlu0 %381
  %v383 = vsel %vm252, %v349, 0.0
  %384 = vadd.xlane.f32.xlu0 %v383
  %v385 = vpop.xlane.xlu0 %384
  %v386 = vsel %vm252, %v350, 0.0
  %387 = vadd.xlane.f32.xlu0 %v386
  %v388 = vpop.xlane.xlu0 %387
  %v389 = vsel %vm252, %v351, 0.0
  %390 = vadd.xlane.f32.xlu0 %v389
  %v391 = vpop.xlane.xlu0 %390
  %v392 = vsel %vm252, %v352, 0.0
  %393 = vadd.xlane.f32.xlu0 %v392
  %v394 = vpop.xlane.xlu0 %393
  %v395 = vsel %vm252, %v353, 0.0
  %396 = vadd.xlane.f32.xlu0 %v395
  %v397 = vpop.xlane.xlu0 %396
  %v398 = vsel %vm252, %v354, 0.0
  %399 = vadd.xlane.f32.xlu0 %v398
  %v400 = vpop.xlane.xlu0 %399
  %v401 = vsel %vm252, %v355, 0.0
  %402 = vadd.xlane.f32.xlu0 %v401
  %v403 = vpop.xlane.xlu0 %402
  %v404 = vmul.f32 %v358, %v307
  %v405 = vmul.f32 %v361, %v307
  %v406 = vmul.f32 %v364, %v307
  %v407 = vmul.f32 %v367, %v307
  %v408 = vmul.f32 %v370, %v307
  %v409 = vmul.f32 %v373, %v307
  %v410 = vmul.f32 %v376, %v307
  %v411 = vmul.f32 %v379, %v307
  %v412 = vmul.f32 %v382, %v307
  %v413 = vmul.f32 %v385, %v307
  %v414 = vmul.f32 %v388, %v307
  %v415 = vmul.f32 %v391, %v307
  %v416 = vmul.f32 %v394, %v307
  %v417 = vmul.f32 %v397, %v307
  %v418 = vmul.f32 %v400, %v307
  %v419 = vmul.f32 %v403, %v307
  %v420 = vadd.f32 %v404, 1e-05
  %v421 = vadd.f32 %v405, 1e-05
  %v422 = vadd.f32 %v406, 1e-05
  %v423 = vadd.f32 %v407, 1e-05
  %v424 = vadd.f32 %v408, 1e-05
  %v425 = vadd.f32 %v409, 1e-05
  %v426 = vadd.f32 %v410, 1e-05
  %v427 = vadd.f32 %v411, 1e-05
  %v428 = vadd.f32 %v412, 1e-05
  %v429 = vadd.f32 %v413, 1e-05
  %v430 = vadd.f32 %v414, 1e-05
  %v431 = vadd.f32 %v415, 1e-05
  %v432 = vadd.f32 %v416, 1e-05
  %v433 = vadd.f32 %v417, 1e-05
  %v434 = vadd.f32 %v418, 1e-05
  %v435 = vadd.f32 %v419, 1e-05
  %v436 = vrsqrt.pop %v420
  %v437 = vmul.f32 %v436, %v420
  %v438 = vmul.f32 %v437, %v436
  %v439 = vmul.f32 0.5, %v438
  %v440 = vsub.f32 1.5, %v439
  %v441 = vmul.f32 %v436, %v440
  %vm442 = vweird.f32 %v420
  %vm443 = vweird.f32 %v436
  %vm444 = vmor %vm442, %vm443
  %v445 = vsel %vm444, %v436, %v441
  %v446 = vrsqrt.pop %v421
  %v447 = vmul.f32 %v446, %v421
  %v448 = vmul.f32 %v447, %v446
  %v449 = vmul.f32 0.5, %v448
  %v450 = vsub.f32 1.5, %v449
  %v451 = vmul.f32 %v446, %v450
  %vm452 = vweird.f32 %v421
  %vm453 = vweird.f32 %v446
  %vm454 = vmor %vm452, %vm453
  %v455 = vsel %vm454, %v446, %v451
  %v456 = vrsqrt.pop %v422
  %v457 = vmul.f32 %v456, %v422
  %v458 = vmul.f32 %v457, %v456
  %v459 = vmul.f32 0.5, %v458
  %v460 = vsub.f32 1.5, %v459
  %v461 = vmul.f32 %v456, %v460
  %vm462 = vweird.f32 %v422
  %vm463 = vweird.f32 %v456
  %vm464 = vmor %vm462, %vm463
  %v465 = vsel %vm464, %v456, %v461
  %v466 = vrsqrt.pop %v423
  %v467 = vmul.f32 %v466, %v423
  %v468 = vmul.f32 %v467, %v466
  %v469 = vmul.f32 0.5, %v468
  %v470 = vsub.f32 1.5, %v469
  %v471 = vmul.f32 %v466, %v470
  %vm472 = vweird.f32 %v423
  %vm473 = vweird.f32 %v466
  %vm474 = vmor %vm472, %vm473
  %v475 = vsel %vm474, %v466, %v471
  %v476 = vrsqrt.pop %v424
  %v477 = vmul.f32 %v476, %v424
  %v478 = vmul.f32 %v477, %v476
  %v479 = vmul.f32 0.5, %v478
  %v480 = vsub.f32 1.5, %v479
  %v481 = vmul.f32 %v476, %v480
  %vm482 = vweird.f32 %v424
  %vm483 = vweird.f32 %v476
  %vm484 = vmor %vm482, %vm483
  %v485 = vsel %vm484, %v476, %v481
  %v486 = vrsqrt.pop %v425
  %v487 = vmul.f32 %v486, %v425
  %v488 = vmul.f32 %v487, %v486
  %v489 = vmul.f32 0.5, %v488
  %v490 = vsub.f32 1.5, %v489
  %v491 = vmul.f32 %v486, %v490
  %vm492 = vweird.f32 %v425
  %vm493 = vweird.f32 %v486
  %vm494 = vmor %vm492, %vm493
  %v495 = vsel %vm494, %v486, %v491
  %v496 = vrsqrt.pop %v426
  %v497 = vmul.f32 %v496, %v426
  %v498 = vmul.f32 %v497, %v496
  %v499 = vmul.f32 0.5, %v498
  %v500 = vsub.f32 1.5, %v499
  %v501 = vmul.f32 %v496, %v500
  %vm502 = vweird.f32 %v426
  %vm503 = vweird.f32 %v496
  %vm504 = vmor %vm502, %vm503
  %v505 = vsel %vm504, %v496, %v501
  %v506 = vrsqrt.pop %v427
  %v507 = vmul.f32 %v506, %v427
  %v508 = vmul.f32 %v507, %v506
  %v509 = vmul.f32 0.5, %v508
  %v510 = vsub.f32 1.5, %v509
  %v511 = vmul.f32 %v506, %v510
  %vm512 = vweird.f32 %v427
  %vm513 = vweird.f32 %v506
  %vm514 = vmor %vm512, %vm513
  %v515 = vsel %vm514, %v506, %v511
  %v516 = vrsqrt.pop %v428
  %v517 = vmul.f32 %v516, %v428
  %v518 = vmul.f32 %v517, %v516
  %v519 = vmul.f32 0.5, %v518
  %v520 = vsub.f32 1.5, %v519
  %v521 = vmul.f32 %v516, %v520
  %vm522 = vweird.f32 %v428
  %vm523 = vweird.f32 %v516
  %vm524 = vmor %vm522, %vm523
  %v525 = vsel %vm524, %v516, %v521
  %v526 = vrsqrt.pop %v429
  %v527 = vmul.f32 %v526, %v429
  %v528 = vmul.f32 %v527, %v526
  %v529 = vmul.f32 0.5, %v528
  %v530 = vsub.f32 1.5, %v529
  %v531 = vmul.f32 %v526, %v530
  %vm532 = vweird.f32 %v429
  %vm533 = vweird.f32 %v526
  %vm534 = vmor %vm532, %vm533
  %v535 = vsel %vm534, %v526, %v531
  %v536 = vrsqrt.pop %v430
  %v537 = vmul.f32 %v536, %v430
  %v538 = vmul.f32 %v537, %v536
  %v539 = vmul.f32 0.5, %v538
  %v540 = vsub.f32 1.5, %v539
  %v541 = vmul.f32 %v536, %v540
  %vm542 = vweird.f32 %v430
  %vm543 = vweird.f32 %v536
  %vm544 = vmor %vm542, %vm543
  %v545 = vsel %vm544, %v536, %v541
  %v546 = vrsqrt.pop %v431
  %v547 = vmul.f32 %v546, %v431
  %v548 = vmul.f32 %v547, %v546
  %v549 = vmul.f32 0.5, %v548
  %v550 = vsub.f32 1.5, %v549
  %v551 = vmul.f32 %v546, %v550
  %vm552 = vweird.f32 %v431
  %vm553 = vweird.f32 %v546
  %vm554 = vmor %vm552, %vm553
  %v555 = vsel %vm554, %v546, %v551
  %v556 = vrsqrt.pop %v432
  %v557 = vmul.f32 %v556, %v432
  %v558 = vmul.f32 %v557, %v556
  %v559 = vmul.f32 0.5, %v558
  %v560 = vsub.f32 1.5, %v559
  %v561 = vmul.f32 %v556, %v560
  %vm562 = vweird.f32 %v432
  %vm563 = vweird.f32 %v556
  %vm564 = vmor %vm562, %vm563
  %v565 = vsel %vm564, %v556, %v561
  %v566 = vrsqrt.pop %v433
  %v567 = vmul.f32 %v566, %v433
  %v568 = vmul.f32 %v567, %v566
  %v569 = vmul.f32 0.5, %v568
  %v570 = vsub.f32 1.5, %v569
  %v571 = vmul.f32 %v566, %v570
  %vm572 = vweird.f32 %v433
  %vm573 = vweird.f32 %v566
  %vm574 = vmor %vm572, %vm573
  %v575 = vsel %vm574, %v566, %v571
  %v576 = vrsqrt.pop %v434
  %v577 = vmul.f32 %v576, %v434
  %v578 = vmul.f32 %v577, %v576
  %v579 = vmul.f32 0.5, %v578
  %v580 = vsub.f32 1.5, %v579
  %v581 = vmul.f32 %v576, %v580
  %vm582 = vweird.f32 %v434
  %vm583 = vweird.f32 %v576
  %vm584 = vmor %vm582, %vm583
  %v585 = vsel %vm584, %v576, %v581
  %v586 = vrsqrt.pop %v435
  %v587 = vmul.f32 %v586, %v435
  %v588 = vmul.f32 %v587, %v586
  %v589 = vmul.f32 0.5, %v588
  %v590 = vsub.f32 1.5, %v589
  %v591 = vmul.f32 %v586, %v590
  %vm592 = vweird.f32 %v435
  %vm593 = vweird.f32 %v586
  %vm594 = vmor %vm592, %vm593
  %v595 = vsel %vm594, %v586, %v591
  %v596 = vmul.f32 %v324, %v445
  %v597 = vmul.f32 %v325, %v455
  %v598 = vmul.f32 %v326, %v465
  %v599 = vmul.f32 %v327, %v475
  %v600 = vmul.f32 %v328, %v485
  %v601 = vmul.f32 %v329, %v495
  %v602 = vmul.f32 %v330, %v505
  %v603 = vmul.f32 %v331, %v515
  %v604 = vmul.f32 %v332, %v525
  %v605 = vmul.f32 %v333, %v535
  %v606 = vmul.f32 %v334, %v545
  %v607 = vmul.f32 %v335, %v555
  %v608 = vmul.f32 %v336, %v565
  %v609 = vmul.f32 %v337, %v575
  %v610 = vmul.f32 %v338, %v585
  %v611 = vmul.f32 %v339, %v595
  %v612 = vld [vmem:[%s2] sm:$0x1]
  %v614 = vperm.slane %v612, 0
  %v616 = vmul.f32 %v596, %v614
  %v617 = vmul.f32 %v597, %v614
  %v618 = vmul.f32 %v598, %v614
  %v619 = vmul.f32 %v599, %v614
  %v620 = vmul.f32 %v600, %v614
  %v621 = vmul.f32 %v601, %v614
  %v622 = vmul.f32 %v602, %v614
  %v623 = vmul.f32 %v603, %v614
  %v624 = vmul.f32 %v604, %v614
  %v625 = vmul.f32 %v605, %v614
  %v626 = vmul.f32 %v606, %v614
  %v627 = vmul.f32 %v607, %v614
  %v628 = vmul.f32 %v608, %v614
  %v629 = vmul.f32 %v609, %v614
  %v630 = vmul.f32 %v610, %v614
  %v631 = vmul.f32 %v611, %v614
  %v632 = vld [vmem:[%s3] sm:$0x1]
  %v634 = vperm.slane %v632, 0
  %v636 = vadd.f32 %v616, %v634
  %v637 = vadd.f32 %v617, %v634
  %v638 = vadd.f32 %v618, %v634
  %v639 = vadd.f32 %v619, %v634
  %v640 = vadd.f32 %v620, %v634
  %v641 = vadd.f32 %v621, %v634
  %v642 = vadd.f32 %v622, %v634
  %v643 = vadd.f32 %v623, %v634
  %v644 = vadd.f32 %v624, %v634
  %v645 = vadd.f32 %v625, %v634
  %v646 = vadd.f32 %v626, %v634
  %v647 = vadd.f32 %v627, %v634
  %v648 = vadd.f32 %v628, %v634
  %v649 = vadd.f32 %v629, %v634
  %v650 = vadd.f32 %v630, %v634
  %v651 = vadd.f32 %v631, %v634
  %652 = vst.msk [vmem:[%s4] sm:$0xff] %vm252, %v636
  %653 = vst.msk [vmem:[%s4 + $0x8] sm:$0xff] %vm252, %v637
  %654 = vst.msk [vmem:[%s4 + $0x10] sm:$0xff] %vm252, %v638
  %655 = vst.msk [vmem:[%s4 + $0x18] sm:$0xff] %vm252, %v639
  %656 = vst.msk [vmem:[%s4 + $0x20] sm:$0xff] %vm252, %v640
  %657 = vst.msk [vmem:[%s4 + $0x28] sm:$0xff] %vm252, %v641
  %658 = vst.msk [vmem:[%s4 + $0x30] sm:$0xff] %vm252, %v642
  %659 = vst.msk [vmem:[%s4 + $0x38] sm:$0xff] %vm252, %v643
  %660 = vst.msk [vmem:[%s4 + $0x40] sm:$0xff] %vm252, %v644
  %661 = vst.msk [vmem:[%s4 + $0x48] sm:$0xff] %vm252, %v645
  %662 = vst.msk [vmem:[%s4 + $0x50] sm:$0xff] %vm252, %v646
  %663 = vst.msk [vmem:[%s4 + $0x58] sm:$0xff] %vm252, %v647
  %664 = vst.msk [vmem:[%s4 + $0x60] sm:$0xff] %vm252, %v648
  %665 = vst.msk [vmem:[%s4 + $0x68] sm:$0xff] %vm252, %v649
  %666 = vst.msk [vmem:[%s4 + $0x70] sm:$0xff] %vm252, %v650
  %667 = vst.msk [vmem:[%s4 + $0x78] sm:$0xff] %vm252, %v651
  // Predicated region
  $region18: #{tpu_custom_call.1} parent=0 // pred_check
    _
  $region19: #{tpu_custom_call.1} parent=0 // pred_check_branch
    %669 = sbr.rel (0) target = $region21
  $region20: #{tpu_custom_call.1} parent=0 // pred_region
    _
  $region21: #{tpu_custom_call.1} parent=0 // pred_fallthru
    _
  // Predicated region
  $region22: #{tpu_custom_call.1} parent=0 // pred_check
    _
  $region23: #{tpu_custom_call.1} parent=0 // pred_check_branch
    %671 = sbr.rel (0) target = $region25
  $region24: #{tpu_custom_call.1} parent=0 // pred_region
    _
  $region25: #{tpu_custom_call.1} parent=0 // pred_fallthru
    _

</llo_original>
